<compile_context>
chip_gen: v7x
topology: tpu7x:2x2x1
jax: 0.10.0
libtpu: 0.0.40
codegen_flags: <defaults>
</compile_context>

<pallas_src>
import jax
import jax.numpy as jnp
from jax.experimental import pallas as pl
from jax.experimental.pallas import tpu as pltpu


def _round_up(x, m):
    return (x + m - 1) // m * m


def _choose_tile(batch, block_b):
    """Batch tile: multiple of 8, capped at block_b, >=2 grid steps when possible."""
    rows = _round_up(batch, 8)
    if rows <= 8:
        return 8
    half = _round_up(pl.cdiv(batch, 2), 8)   # at least 2 steps -> both v7x TCs get work
    return _round_up(max(8, min(block_b, half)), 8)


def grasp_critic_kernel(x_ref, w1_ref, w2_ref, w3_ref, b_ref, o_ref,
                        h1_ref, h2_ref):
    op = o_ref.shape[1]
    cdt = w1_ref.dtype  # MXU operand / scratch dtype (bf16 by default, f32 for exact path)

    # Hidden layer 1: Linear + ReLU.  f32 accumulate, f32 bias/ReLU, one cast on store.
    x = x_ref[...].astype(cdt)                     # in-kernel cast (VPU slot is idle)
    h1 = jnp.dot(x, w1_ref[...], preferred_element_type=jnp.float32)
    h1 = jnp.maximum(h1 + b_ref[0:1, :], 0.0)
    h1_ref[...] = h1.astype(h1_ref.dtype)

    # Hidden layer 2: Linear + ReLU (activate_final=True on the MLP).
    h2 = jnp.dot(h1_ref[...], w2_ref[...], preferred_element_type=jnp.float32)
    h2 = jnp.maximum(h2 + b_ref[1:2, :], 0.0)
    h2_ref[...] = h2.astype(h2_ref.dtype)

    # output_layer: Linear(hidden, output_dim), no activation.  w3 is already narrow
    # (Hp, o_pad), so the store only touches the useful columns (+ <=5 pad lanes).
    out = jnp.dot(h2_ref[...], w3_ref[...], preferred_element_type=jnp.float32)
    o_ref[...] = out + b_ref[2:3, :op]


def pack_params(params, compute_dtype=jnp.bfloat16):
    """Lane-pad hidden dim to 128, keep output narrow, pack biases in one tile.

    Returns ((w1p, w2p, w3p, bias_pack), out_dim).  Zero padding is
    mathematically inert (ReLU(0)=0; padded output columns are sliced away).
    """
    w1, b1, w2, b2, w3, b3 = params
    d, h = w1.shape
    out_dim = w3.shape[1]
    h_pad = _round_up(max(h, 128), 128)          # lane-dense hidden width
    o_pad = _round_up(max(out_dim, 8), 8)        # narrow HBM-visible output width
    assert o_pad <= h_pad

    w1p = jnp.zeros((d, h_pad), compute_dtype).at[:, :h].set(w1.astype(compute_dtype))
    w2p = jnp.zeros((h_pad, h_pad), compute_dtype).at[:h, :h].set(w2.astype(compute_dtype))
    w3p = jnp.zeros((h_pad, o_pad), compute_dtype).at[:h, :out_dim].set(w3.astype(compute_dtype))

    # Single bias tile: row 0 = b1, row 1 = b2, row 2 = b3 (f32, one (8, Hp) DMA).
    bias = jnp.zeros((8, h_pad), jnp.float32)
    bias = bias.at[0, :h].set(b1.reshape(-1).astype(jnp.float32))
    bias = bias.at[1, :h].set(b2.reshape(-1).astype(jnp.float32))
    bias = bias.at[2, :out_dim].set(b3.reshape(-1).astype(jnp.float32))
    return (w1p, w2p, w3p, bias), out_dim


def grasp_critic_forward(obs, packed_params, out_dim, *, block_b=2048):
    """obs: (B, obs_dim) float32 -> (B, out_dim) float32."""
    w1, w2, w3, bias = packed_params
    B, D = obs.shape
    Hp = w1.shape[1]
    Op = w3.shape[1]
    cdt = w1.dtype

    TB = _choose_tile(B, block_b)
    grid = (pl.cdiv(B, TB),)          # ragged last tile handled by Pallas (masked writeback)

    witem = jnp.dtype(cdt).itemsize
    cost = pl.CostEstimate(
        flops=2 * B * (D * Hp + Hp * Hp + Hp * Op),
        transcendentals=0,
        bytes_accessed=int(B * D * obs.dtype.itemsize + B * Op * 4
                           + (w1.size + w2.size + w3.size) * witem + bias.size * 4),
    )

    out = pl.pallas_call(
        grasp_critic_kernel,
        out_shape=jax.ShapeDtypeStruct((B, Op), jnp.float32),
        grid=grid,
        in_specs=[
            pl.BlockSpec((TB, D), lambda i: (i, 0)),      # obs tile, streamed (f32, cast in kernel)
            pl.BlockSpec((D, Hp), lambda i: (0, 0)),      # weights/bias: grid-invariant, VMEM resident
            pl.BlockSpec((Hp, Hp), lambda i: (0, 0)),
            pl.BlockSpec((Hp, Op), lambda i: (0, 0)),
            pl.BlockSpec(bias.shape, lambda i: (0, 0)),
        ],
        out_specs=pl.BlockSpec((TB, Op), lambda i: (i, 0)),
        scratch_shapes=[
            pltpu.VMEM((TB, Hp), cdt),   # h1 (bf16 by default: half the VMEM round-trip bytes)
            pltpu.VMEM((TB, Hp), cdt),   # h2
        ],
        compiler_params=pltpu.CompilerParams(
            dimension_semantics=("parallel",)),
        cost_estimate=cost,
    )(obs, w1, w2, w3, bias)

    return out[:, :out_dim] if out_dim != Op else out


def init_params(key, obs_dim, hidden, output_dim, init_final=0.01):
    """Deterministic synthetic parameters (PyTorch-shaped, stored transposed)."""
    k1, k2, k3, k4, k5, k6 = jax.random.split(key, 6)
    bnd1 = 1.0 / jnp.sqrt(obs_dim)
    w1 = jax.random.uniform(k1, (obs_dim, hidden), jnp.float32, -bnd1, bnd1)
    b1 = jax.random.uniform(k2, (1, hidden), jnp.float32, -bnd1, bnd1)
    bnd2 = 1.0 / jnp.sqrt(hidden)
    w2 = jax.random.uniform(k3, (hidden, hidden), jnp.float32, -bnd2, bnd2)
    b2 = jax.random.uniform(k4, (1, hidden), jnp.float32, -bnd2, bnd2)
    # output_layer: nn.init.uniform_(-init_final, init_final) for weight & bias
    w3 = jax.random.uniform(k5, (hidden, output_dim), jnp.float32, -init_final, init_final)
    b3 = jax.random.uniform(k6, (1, output_dim), jnp.float32, -init_final, init_final)
    return (w1, b1, w2, b2, w3, b3)


def _reference_forward(obs, params):
    """Pure-JAX f32 reference of the original module math."""
    w1, b1, w2, b2, w3, b3 = params
    h = jnp.maximum(obs @ w1 + b1, 0.0)
    h = jnp.maximum(h @ w2 + b2, 0.0)
    return h @ w3 + b3


if __name__ == "__main__":
    key = jax.random.PRNGKey(0)
    k_obs, k_par, k_obs2 = jax.random.split(key, 3)

    B, OBS_DIM, HIDDEN, OUT_DIM = 8, 32, 32, 3
    obs = jax.random.normal(k_obs, (B, OBS_DIM), jnp.float32)
    params = init_params(k_par, OBS_DIM, HIDDEN, OUT_DIM, init_final=0.01)
    ref = _reference_forward(obs, params)

    # --- f32 compute path (bit-level semantics check vs. the PyTorch math) ---
    packed_f32, out_dim = pack_params(params, compute_dtype=jnp.float32)
    out = jax.block_until_ready(grasp_critic_forward(obs, packed_f32, out_dim))
    assert out.shape == (B, OUT_DIM)
    assert jnp.allclose(out, ref, atol=1e-5, rtol=1e-5)

    # --- ragged batch / multi-step grid (exercises edge-tile masking + parallel axis) ---
    B2 = 300
    obs2 = jax.random.normal(k_obs2, (B2, OBS_DIM), jnp.float32)
    ref2 = _reference_forward(obs2, params)
    out2 = jax.block_until_ready(grasp_critic_forward(obs2, packed_f32, out_dim, block_b=128))
    assert out2.shape == (B2, OUT_DIM)
    assert jnp.allclose(out2, ref2, atol=1e-5, rtol=1e-5)

    # --- default bf16 operand/scratch path (f32 accumulate; fast path on v6e/v7x) ---
    # NOTE: intentionally an approximation of the f32 PyTorch module (bf16 MXU operands).
    packed_bf16, _ = pack_params(params)  # compute_dtype=bf16 by default
    out_b = jax.block_until_ready(grasp_critic_forward(obs2, packed_bf16, out_dim))
    assert out_b.shape == (B2, OUT_DIM)
    assert jnp.allclose(out_b, ref2, atol=5e-2, rtol=5e-2)

    print("KERNEL_OK")
</pallas_src>

<mosaic_0001>
module attributes {stable_mosaic.version = 11 : i64} {
  func.func @grasp_critic_kernel(%arg0: i32, %arg1: memref<8x32xf32, #tpu.memory_space<vmem>>, %arg2: memref<32x128xf32, #tpu.memory_space<vmem>>, %arg3: memref<128x128xf32, #tpu.memory_space<vmem>>, %arg4: memref<128x8xf32, #tpu.memory_space<vmem>>, %arg5: memref<8x128xf32, #tpu.memory_space<vmem>>, %arg6: memref<8x8xf32, #tpu.memory_space<vmem>>, %arg7: memref<8x128xf32, #tpu.memory_space<vmem>>, %arg8: memref<8x128xf32, #tpu.memory_space<vmem>>) attributes {dimension_semantics = [#tpu.dimension_semantics<parallel>], iteration_bounds = array<i64: 1>, scalar_prefetch = 0 : i64, scratch_operands = 2 : i64, tpu.core_type = #tpu.core_type<tc>, window_params = [{transform_indices = @transform_0, window_bounds = array<i64: 8, 32>}, {pipeline_mode = #tpu.pipeline_mode<synchronous>, transform_indices = @transform_1, window_bounds = array<i64: 32, 128>}, {pipeline_mode = #tpu.pipeline_mode<synchronous>, transform_indices = @transform_2, window_bounds = array<i64: 128, 128>}, {pipeline_mode = #tpu.pipeline_mode<synchronous>, transform_indices = @transform_3, window_bounds = array<i64: 128, 8>}, {pipeline_mode = #tpu.pipeline_mode<synchronous>, transform_indices = @transform_4, window_bounds = array<i64: 8, 128>}, {transform_indices = @transform_5, window_bounds = array<i64: 8, 8>}]} {
    %c0 = arith.constant 0 : index
    %c0_0 = arith.constant 0 : index
    %0 = vector.load %arg1[%c0, %c0_0] : memref<8x32xf32, #tpu.memory_space<vmem>>, vector<8x32xf32>
    %c0_1 = arith.constant 0 : index
    %c0_2 = arith.constant 0 : index
    %1 = vector.load %arg2[%c0_1, %c0_2] : memref<32x128xf32, #tpu.memory_space<vmem>>, vector<32x128xf32>
    %cst = arith.constant dense<0.000000e+00> : vector<8x128xf32>
    %2 = tpu.matmul %0, %1, %cst {dimension_numbers = #tpu.dot_dimension_numbers<[1], [0], [0], [1], [0, 0, 1, 1], [], []>} : vector<8x32xf32>, vector<32x128xf32>, vector<8x128xf32> -> vector<8x128xf32>
    %c0_3 = arith.constant 0 : index
    %c0_4 = arith.constant 0 : index
    %3 = vector.load %arg5[%c0_3, %c0_4] : memref<8x128xf32, #tpu.memory_space<vmem>>, vector<1x128xf32>
    %4 = vector.broadcast %3 : vector<1x128xf32> to vector<8x128xf32>
    %5 = arith.addf %2, %4 : vector<8x128xf32>
    %cst_5 = arith.constant 0.000000e+00 : f32
    %6 = vector.broadcast %cst_5 : f32 to vector<8x128xf32>
    %7 = arith.maximumf %5, %6 : vector<8x128xf32>
    %c0_6 = arith.constant 0 : index
    %c0_7 = arith.constant 0 : index
    %8 = vector.load %arg7[%c0_6, %c0_7] : memref<8x128xf32, #tpu.memory_space<vmem>>, vector<8x128xf32>
    tpu.vector_store %arg7[%c0_6, %c0_7], %7 {strides = array<i32>} : memref<8x128xf32, #tpu.memory_space<vmem>>, vector<8x128xf32>,
    %c0_8 = arith.constant 0 : index
    %c0_9 = arith.constant 0 : index
    %9 = vector.load %arg7[%c0_8, %c0_9] : memref<8x128xf32, #tpu.memory_space<vmem>>, vector<8x128xf32>
    %c0_10 = arith.constant 0 : index
    %c0_11 = arith.constant 0 : index
    %10 = vector.load %arg3[%c0_10, %c0_11] : memref<128x128xf32, #tpu.memory_space<vmem>>, vector<128x128xf32>
    %cst_12 = arith.constant dense<0.000000e+00> : vector<8x128xf32>
    %11 = tpu.matmul %9, %10, %cst_12 {dimension_numbers = #tpu.dot_dimension_numbers<[1], [0], [0], [1], [0, 0, 1, 1], [], []>} : vector<8x128xf32>, vector<128x128xf32>, vector<8x128xf32> -> vector<8x128xf32>
    %c1 = arith.constant 1 : index
    %c0_13 = arith.constant 0 : index
    %12 = vector.load %arg5[%c1, %c0_13] : memref<8x128xf32, #tpu.memory_space<vmem>>, vector<1x128xf32>
    %13 = vector.broadcast %12 : vector<1x128xf32> to vector<8x128xf32>
    %14 = arith.addf %11, %13 : vector<8x128xf32>
    %cst_14 = arith.constant 0.000000e+00 : f32
    %15 = vector.broadcast %cst_14 : f32 to vector<8x128xf32>
    %16 = arith.maximumf %14, %15 : vector<8x128xf32>
    %c0_15 = arith.constant 0 : index
    %c0_16 = arith.constant 0 : index
    %17 = vector.load %arg8[%c0_15, %c0_16] : memref<8x128xf32, #tpu.memory_space<vmem>>, vector<8x128xf32>
    tpu.vector_store %arg8[%c0_15, %c0_16], %16 {strides = array<i32>} : memref<8x128xf32, #tpu.memory_space<vmem>>, vector<8x128xf32>,
    %c0_17 = arith.constant 0 : index
    %c0_18 = arith.constant 0 : index
    %18 = vector.load %arg8[%c0_17, %c0_18] : memref<8x128xf32, #tpu.memory_space<vmem>>, vector<8x128xf32>
    %c0_19 = arith.constant 0 : index
    %c0_20 = arith.constant 0 : index
    %19 = vector.load %arg4[%c0_19, %c0_20] : memref<128x8xf32, #tpu.memory_space<vmem>>, vector<128x8xf32>
    %cst_21 = arith.constant dense<0.000000e+00> : vector<8x8xf32>
    %20 = tpu.matmul %18, %19, %cst_21 {dimension_numbers = #tpu.dot_dimension_numbers<[1], [0], [0], [1], [0, 0, 1, 1], [], []>} : vector<8x128xf32>, vector<128x8xf32>, vector<8x8xf32> -> vector<8x8xf32>
    %c2 = arith.constant 2 : index
    %c0_22 = arith.constant 0 : index
    %21 = vector.load %arg5[%c2, %c0_22] : memref<8x128xf32, #tpu.memory_space<vmem>>, vector<1x8xf32>
    %22 = vector.broadcast %21 : vector<1x8xf32> to vector<8x8xf32>
    %23 = arith.addf %20, %22 : vector<8x8xf32>
    %c0_23 = arith.constant 0 : index
    %c0_24 = arith.constant 0 : index
    %24 = vector.load %arg6[%c0_23, %c0_24] : memref<8x8xf32, #tpu.memory_space<vmem>>, vector<8x8xf32>
    tpu.vector_store %arg6[%c0_23, %c0_24], %23 {strides = array<i32>} : memref<8x8xf32, #tpu.memory_space<vmem>>, vector<8x8xf32>,
    return
  }
  func.func @transform_0(%arg0: i32) -> (i32, i32) {
    %c0_i32 = arith.constant 0 : i32
    %c0_i32_0 = arith.constant 0 : i32
    return %arg0, %c0_i32 : i32, i32
  }
  func.func @transform_1(%arg0: i32) -> (i32, i32) {
    %c0_i32 = arith.constant 0 : i32
    %c0_i32_0 = arith.constant 0 : i32
    %c0_i32_1 = arith.constant 0 : i32
    return %c0_i32, %c0_i32_0 : i32, i32
  }
  func.func @transform_2(%arg0: i32) -> (i32, i32) {
    %c0_i32 = arith.constant 0 : i32
    %c0_i32_0 = arith.constant 0 : i32
    %c0_i32_1 = arith.constant 0 : i32
    return %c0_i32, %c0_i32_0 : i32, i32
  }
  func.func @transform_3(%arg0: i32) -> (i32, i32) {
    %c0_i32 = arith.constant 0 : i32
    %c0_i32_0 = arith.constant 0 : i32
    %c0_i32_1 = arith.constant 0 : i32
    return %c0_i32, %c0_i32_0 : i32, i32
  }
  func.func @transform_4(%arg0: i32) -> (i32, i32) {
    %c0_i32 = arith.constant 0 : i32
    %c0_i32_0 = arith.constant 0 : i32
    %c0_i32_1 = arith.constant 0 : i32
    return %c0_i32, %c0_i32_0 : i32, i32
  }
  func.func @transform_5(%arg0: i32) -> (i32, i32) {
    %c0_i32 = arith.constant 0 : i32
    %c0_i32_0 = arith.constant 0 : i32
    return %arg0, %c0_i32 : i32, i32
  }
}

</mosaic_0001>

<llo_original>
// kernel: tpu_custom_call.1
$region0: #{tpu_custom_call.1}
  #allocation0 [shape = 'u32[]', space=smem, size = 0x4, offset = 0x4, fixed_abs, tag = 'smem constant byte address 0x4 - core index']
  #allocation1 [shape = 'u32[144,128]{1,0:T(1,128)}', space=vmem, size = 0x12000, scoped, tag = 'internal scratch']
  #allocation2 [shape = 'f32[8,128]{1,0:T(8,128)}', space=vmem, size = 0x1000, scoped, tag = 'scratch operand']
  #allocation3 [shape = 'f32[8,128]{1,0:T(8,128)}', space=vmem, size = 0x1000, scoped, tag = 'scratch operand']
  %s0 = inlined_call_operand.vmem [shape: f32[8,32], index: 0, kind: input, shape index: {}]
  %s1 = inlined_call_operand.hbm [shape: f32[32,128], index: 1, kind: input, shape index: {}]
  %s2 = inlined_call_operand.vmem [shape: f32[128,128], index: 2, kind: input, shape index: {}]
  %s3 = inlined_call_operand.vmem [shape: f32[128,8], index: 3, kind: input, shape index: {}]
  %s4 = inlined_call_operand.hbm [shape: f32[8,128], index: 4, kind: input, shape index: {}]
  %s5 = inlined_call_operand.hbm [shape: f32[8,8], index: 5, kind: output, shape index: {}]
  %s6 = sld [smem:[#allocation0]]
  $region38: #{tpu_custom_call.1} parent=0
    _
  %s8 = ssub.s32 1, %s6
  %s9 = scalar_select 0, %s8, %s6
  $region1: #{tpu_custom_call.1} parent=0
    #allocation4 [shape = 'u8[16384]{0}', space=vmem, size = 0x4000, scoped, tag = 'input window, operand 1, single buffered']
    #allocation5 [shape = 's32[1]{0}', space=sflag, size = 0x4, scoped, tag = 'scoped memory for tpu_custom_call.1']
    #allocation6 [shape = 's32[1]{0}', space=sflag, size = 0x4, scoped, tag = 'scoped memory for tpu_custom_call.1']
    #allocation7 [shape = 'u8[4096]{0}', space=vmem, size = 0x1000, scoped, tag = 'input window, operand 4, single buffered']
    #allocation8 [shape = 's32[1]{0}', space=sflag, size = 0x4, scoped, tag = 'scoped memory for tpu_custom_call.1']
    #allocation9 [shape = 'u8[4096]{0}', space=vmem, size = 0x1000, scoped, tag = 'output window, operand 0, single buffered']
    %10 = vsyncpa [#allocation5], 0
    %11 = vsyncpa [#allocation8], 0
    %12 = vsyncpa [#allocation6], 0
    // Predicated region
    $region2: #{tpu_custom_call.1} parent=1 // pred_check
      _
    $region3: #{tpu_custom_call.1} parent=1 // pred_check_branch
      %14 = sbr.rel (0) target = $region5
    $region4: #{tpu_custom_call.1} parent=1 // pred_region
      _
    $region5: #{tpu_custom_call.1} parent=1 // pred_fallthru
      _
    // Predicated region
    $region6: #{tpu_custom_call.1} parent=1 // pred_check
      _
    $region7: #{tpu_custom_call.1} parent=1 // pred_check_branch
      %16 = sbr.rel (0) target = $region9
    $region8: #{tpu_custom_call.1} parent=1 // pred_region
      %s18 = ssub.s32 512, 512
      %19 = vsyncadd [#allocation5], %s18
      %s20 = sshll.u32 [#allocation4], 4
      %s21 = int_to_ptr.vmem [resolvable:$true] %s20
      %26 = dma.hbm_to_vmem [thread:$0]  %s1, 512, %s21, [#allocation5], 128, 128, 8
    $region9: #{tpu_custom_call.1} parent=1 // pred_fallthru
      _
    // Predicated region
    $region10: #{tpu_custom_call.1} parent=1 // pred_check
      _
    $region11: #{tpu_custom_call.1} parent=1 // pred_check_branch
      %28 = sbr.rel (0) target = $region13
    $region12: #{tpu_custom_call.1} parent=1 // pred_region
      _
    $region13: #{tpu_custom_call.1} parent=1 // pred_fallthru
      _
    // Predicated region
    $region14: #{tpu_custom_call.1} parent=1 // pred_check
      _
    $region15: #{tpu_custom_call.1} parent=1 // pred_check_branch
      %30 = sbr.rel (0) target = $region17
    $region16: #{tpu_custom_call.1} parent=1 // pred_region
      _
    $region17: #{tpu_custom_call.1} parent=1 // pred_fallthru
      _
    // Predicated region
    $region18: #{tpu_custom_call.1} parent=1 // pred_check
      _
    $region19: #{tpu_custom_call.1} parent=1 // pred_check_branch
      %32 = sbr.rel (0) target = $region21
    $region20: #{tpu_custom_call.1} parent=1 // pred_region
      %s34 = ssub.s32 128, 128
      %35 = vsyncadd [#allocation8], %s34
      %s37 = sshll.u32 [#allocation7], 4
      %s38 = int_to_ptr.vmem [resolvable:$true] %s37
      %40 = dma.hbm_to_vmem [thread:$0]  %s4, 128, %s38, [#allocation8]
    $region21: #{tpu_custom_call.1} parent=1 // pred_fallthru
      _
    // Predicated region
    $region22: #{tpu_custom_call.1} parent=1 // pred_check
      _
    $region23: #{tpu_custom_call.1} parent=1 // pred_check_branch
      %42 = sbr.rel (0) target = $region25
    $region24: #{tpu_custom_call.1} parent=1 // pred_region
      %43 = dma.done [#allocation5], 512
    $region25: #{tpu_custom_call.1} parent=1 // pred_fallthru
      _
    // Predicated region
    $region26: #{tpu_custom_call.1} parent=1 // pred_check
      _
    $region27: #{tpu_custom_call.1} parent=1 // pred_check_branch
      %45 = sbr.rel (0) target = $region29
    $region28: #{tpu_custom_call.1} parent=1 // pred_region
      %46 = dma.done [#allocation8], 128
    $region29: #{tpu_custom_call.1} parent=1 // pred_fallthru
      _
    %v47 = vld [vmem:[%s0] sm:$0xff]
    %v48 = vld [vmem:[#allocation4] sm:$0xff]
    %v49 = vld [vmem:[#allocation4 + $0x8] sm:$0xff]
    %v50 = vld [vmem:[#allocation4 + $0x10] sm:$0xff]
    %v51 = vld [vmem:[#allocation4 + $0x18] sm:$0xff]
    %v52 = vld [vmem:[#allocation7] sm:$0x1]
    %v53 = vlaneseq
    %v54 = vshrl.u32 %v53, 7
    %v55 = vsub.s32 0, %v54
    %v56 = vrot.slane %v52, %v55
    %vm57 = vcmask 261120
    %v59 = vsel %vm57, %v47, 0
    %61 = vmatprep.subr.mxu0 0.0
    %62 = vmatpush1.msra.mxu0 %v48
    %63 = vmatprep.subr.mxu0 0.0
    %64 = vmatpush1.msra.mxu0 %v49
    %65 = vmatprep.subr.mxu0 0.0
    %66 = vmatpush1.msra.mxu0 %v50
    %67 = vmatprep.subr.mxu0 0.0
    %68 = vmatpush1.msra.mxu0 %v51
    %69 = vmatprep.subr.mxu0 0.0
    %70 = vmatpush1.msra.mxu0 0.0
    %71 = vmatprep.subr.mxu0 0.0
    %72 = vmatpush1.msra.mxu0 0.0
    %73 = vmatprep.subr.mxu0 0.0
    %74 = vmatpush1.msra.mxu0 0.0
    %75 = vmatprep.subr.mxu0 0.0
    %76 = vmatpush1.msra.mxu0 0.0
    %77 = vmatprep.subr.mxu0 0.0
    %78 = vmatpush1.msra.mxu0 0.0
    %79 = vmatprep.subr.mxu0 0.0
    %80 = vmatpush1.msra.mxu0 0.0
    %81 = vmatprep.subr.mxu0 0.0
    %82 = vmatpush1.msra.mxu0 0.0
    %83 = vmatprep.subr.mxu0 0.0
    %84 = vmatpush1.msra.mxu0 0.0
    %85 = vmatprep.subr.mxu0 0.0
    %86 = vmatpush1.msra.mxu0 0.0
    %87 = vmatprep.subr.mxu0 0.0
    %88 = vmatpush1.msra.mxu0 0.0
    %89 = vmatprep.subr.mxu0 0.0
    %90 = vmatpush1.msra.mxu0 0.0
    %91 = vmatprep.subr.mxu0 0.0
    %92 = vmatpush1.msra.mxu0 0.0
    %93 = vmatprep.subr.mxu0 0.0
    %94 = vmatpush1.msra.mxu0 0.0
    %95 = vmatprep.subr.mxu0 0.0
    %96 = vmatpush1.msra.mxu0 0.0
    %97 = vmatprep.subr.mxu0 0.0
    %98 = vmatpush1.msra.mxu0 0.0
    %99 = vmatprep.subr.mxu0 0.0
    %100 = vmatpush1.msra.mxu0 0.0
    %101 = vmatprep.subr.mxu0 0.0
    %102 = vmatpush1.msra.mxu0 0.0
    %103 = vmatprep.subr.mxu0 0.0
    %104 = vmatpush1.msra.mxu0 0.0
    %105 = vmatprep.subr.mxu0 0.0
    %106 = vmatpush1.msra.mxu0 0.0
    %107 = vmatprep.subr.mxu0 0.0
    %108 = vmatpush1.msra.mxu0 0.0
    %109 = vmatprep.subr.mxu0 0.0
    %110 = vmatpush1.msra.mxu0 0.0
    %111 = vmatprep.subr.mxu0 0.0
    %112 = vmatpush1.msra.mxu0 0.0
    %113 = vmatprep.subr.mxu0 0.0
    %114 = vmatpush1.msra.mxu0 0.0
    %115 = vmatprep.subr.mxu0 0.0
    %116 = vmatpush1.msra.mxu0 0.0
    %117 = vmatprep.subr.mxu0 0.0
    %118 = vmatpush1.msra.mxu0 0.0
    %119 = vmatprep.subr.mxu0 0.0
    %120 = vmatpush1.msra.mxu0 0.0
    %121 = vmatprep.subr.mxu0 0.0
    %122 = vmatpush1.msra.mxu0 0.0
    %123 = vmatprep.subr.mxu0 0.0
    %124 = vmatpush1.msra.mxu0 0.0
    %125 = vmatprep.mubr.f32.mxu0 0.0
    %126 = vmatmul.mubr.f32.gmra.mrb[0].mxu0 %v59
    %v127 = vpop.f32.mrb[0].mxu0
    %v128 = vadd.f32 %v56, %v127
    %v129 = vpop.f32.mrb[0].mxu0
    %130 = vdwg.mxu0
    %v131 = vmax.f32 %v128, 0.0
    %132 = vst [vmem:[#allocation2] sm:$0xff] %v131
    %v133 = vld [vmem:[#allocation2] sm:$0xff]
    %v134 = vld [vmem:[%s2] sm:$0xff]
    %v135 = vld [vmem:[%s2 + $0x8] sm:$0xff]
    %v136 = vld [vmem:[%s2 + $0x10] sm:$0xff]
    %v137 = vld [vmem:[%s2 + $0x18] sm:$0xff]
    %v138 = vld [vmem:[%s2 + $0x20] sm:$0xff]
    %v139 = vld [vmem:[%s2 + $0x28] sm:$0xff]
    %v140 = vld [vmem:[%s2 + $0x30] sm:$0xff]
    %v141 = vld [vmem:[%s2 + $0x38] sm:$0xff]
    %v142 = vld [vmem:[%s2 + $0x40] sm:$0xff]
    %v143 = vld [vmem:[%s2 + $0x48] sm:$0xff]
    %v144 = vld [vmem:[%s2 + $0x50] sm:$0xff]
    %v145 = vld [vmem:[%s2 + $0x58] sm:$0xff]
    %v146 = vld [vmem:[%s2 + $0x60] sm:$0xff]
    %v147 = vld [vmem:[%s2 + $0x68] sm:$0xff]
    %v148 = vld [vmem:[%s2 + $0x70] sm:$0xff]
    %v149 = vld [vmem:[%s2 + $0x78] sm:$0xff]
    %v150 = vld [vmem:[#allocation7 + $0x1] sm:$0x1]
    %v151 = vlaneseq
    %v152 = vshrl.u32 %v151, 7
    %v153 = vsub.s32 0, %v152
    %v154 = vrot.slane %v150, %v153
    %155 = vmatprep.subr.mxu0 0.0
    %156 = vmatpush1.msra.mxu0 %v134
    %157 = vmatprep.subr.mxu0 0.0
    %158 = vmatpush1.msra.mxu0 %v135
    %159 = vmatprep.subr.mxu0 0.0
    %160 = vmatpush1.msra.mxu0 %v136
    %161 = vmatprep.subr.mxu0 0.0
    %162 = vmatpush1.msra.mxu0 %v137
    %163 = vmatprep.subr.mxu0 0.0
    %164 = vmatpush1.msra.mxu0 %v138
    %165 = vmatprep.subr.mxu0 0.0
    %166 = vmatpush1.msra.mxu0 %v139
    %167 = vmatprep.subr.mxu0 0.0
    %168 = vmatpush1.msra.mxu0 %v140
    %169 = vmatprep.subr.mxu0 0.0
    %170 = vmatpush1.msra.mxu0 %v141
    %171 = vmatprep.subr.mxu0 0.0
    %172 = vmatpush1.msra.mxu0 %v142
    %173 = vmatprep.subr.mxu0 0.0
    %174 = vmatpush1.msra.mxu0 %v143
    %175 = vmatprep.subr.mxu0 0.0
    %176 = vmatpush1.msra.mxu0 %v144
    %177 = vmatprep.subr.mxu0 0.0
    %178 = vmatpush1.msra.mxu0 %v145
    %179 = vmatprep.subr.mxu0 0.0
    %180 = vmatpush1.msra.mxu0 %v146
    %181 = vmatprep.subr.mxu0 0.0
    %182 = vmatpush1.msra.mxu0 %v147
    %183 = vmatprep.subr.mxu0 0.0
    %184 = vmatpush1.msra.mxu0 %v148
    %185 = vmatprep.subr.mxu0 0.0
    %186 = vmatpush1.msra.mxu0 %v149
    %187 = vmatprep.subr.mxu0 0.0
    %188 = vmatpush1.msra.mxu0 0.0
    %189 = vmatprep.subr.mxu0 0.0
    %190 = vmatpush1.msra.mxu0 0.0
    %191 = vmatprep.subr.mxu0 0.0
    %192 = vmatpush1.msra.mxu0 0.0
    %193 = vmatprep.subr.mxu0 0.0
    %194 = vmatpush1.msra.mxu0 0.0
    %195 = vmatprep.subr.mxu0 0.0
    %196 = vmatpush1.msra.mxu0 0.0
    %197 = vmatprep.subr.mxu0 0.0
    %198 = vmatpush1.msra.mxu0 0.0
    %199 = vmatprep.subr.mxu0 0.0
    %200 = vmatpush1.msra.mxu0 0.0
    %201 = vmatprep.subr.mxu0 0.0
    %202 = vmatpush1.msra.mxu0 0.0
    %203 = vmatprep.subr.mxu0 0.0
    %204 = vmatpush1.msra.mxu0 0.0
    %205 = vmatprep.subr.mxu0 0.0
    %206 = vmatpush1.msra.mxu0 0.0
    %207 = vmatprep.subr.mxu0 0.0
    %208 = vmatpush1.msra.mxu0 0.0
    %209 = vmatprep.subr.mxu0 0.0
    %210 = vmatpush1.msra.mxu0 0.0
    %211 = vmatprep.subr.mxu0 0.0
    %212 = vmatpush1.msra.mxu0 0.0
    %213 = vmatprep.subr.mxu0 0.0
    %214 = vmatpush1.msra.mxu0 0.0
    %215 = vmatprep.subr.mxu0 0.0
    %216 = vmatpush1.msra.mxu0 0.0
    %217 = vmatprep.subr.mxu0 0.0
    %218 = vmatpush1.msra.mxu0 0.0
    %219 = vmatprep.mubr.f32.mxu0 0.0
    %220 = vmatmul.mubr.f32.gmra.mrb[0].mxu0 %v133
    %v221 = vpop.f32.mrb[0].mxu0
    %v222 = vadd.f32 %v154, %v221
    %v223 = vpop.f32.mrb[0].mxu0
    %224 = vdwg.mxu0
    %v225 = vmax.f32 %v222, 0.0
    %226 = vst [vmem:[#allocation3] sm:$0xff] %v225
    %v227 = vld [vmem:[#allocation3] sm:$0xff]
    %v228 = vld [vmem:[%s3] sm:$0xff]
    %v229 = vld [vmem:[%s3 + $0x8] sm:$0xff]
    %v230 = vld [vmem:[%s3 + $0x10] sm:$0xff]
    %v231 = vld [vmem:[%s3 + $0x18] sm:$0xff]
    %v232 = vld [vmem:[%s3 + $0x20] sm:$0xff]
    %v233 = vld [vmem:[%s3 + $0x28] sm:$0xff]
    %v234 = vld [vmem:[%s3 + $0x30] sm:$0xff]
    %v235 = vld [vmem:[%s3 + $0x38] sm:$0xff]
    %v236 = vld [vmem:[%s3 + $0x40] sm:$0xff]
    %v237 = vld [vmem:[%s3 + $0x48] sm:$0xff]
    %v238 = vld [vmem:[%s3 + $0x50] sm:$0xff]
    %v239 = vld [vmem:[%s3 + $0x58] sm:$0xff]
    %v240 = vld [vmem:[%s3 + $0x60] sm:$0xff]
    %v241 = vld [vmem:[%s3 + $0x68] sm:$0xff]
    %v242 = vld [vmem:[%s3 + $0x70] sm:$0xff]
    %v243 = vld [vmem:[%s3 + $0x78] sm:$0xff]
    %v244 = vld [vmem:[#allocation7 + $0x2] sm:$0x1]
    %v245 = vlaneseq
    %v246 = vshrl.u32 %v245, 7
    %v247 = vsub.s32 0, %v246
    %v248 = vrot.slane %v244, %v247
    %249 = vmatprep.subr.mxu0 0.0
    %250 = vmatpush1.msra.mxu0 %v228
    %251 = vmatprep.subr.mxu0 0.0
    %252 = vmatpush1.msra.mxu0 %v229
    %253 = vmatprep.subr.mxu0 0.0
    %254 = vmatpush1.msra.mxu0 %v230
    %255 = vmatprep.subr.mxu0 0.0
    %256 = vmatpush1.msra.mxu0 %v231
    %257 = vmatprep.subr.mxu0 0.0
    %258 = vmatpush1.msra.mxu0 %v232
    %259 = vmatprep.subr.mxu0 0.0
    %260 = vmatpush1.msra.mxu0 %v233
    %261 = vmatprep.subr.mxu0 0.0
    %262 = vmatpush1.msra.mxu0 %v234
    %263 = vmatprep.subr.mxu0 0.0
    %264 = vmatpush1.msra.mxu0 %v235
    %265 = vmatprep.subr.mxu0 0.0
    %266 = vmatpush1.msra.mxu0 %v236
    %267 = vmatprep.subr.mxu0 0.0
    %268 = vmatpush1.msra.mxu0 %v237
    %269 = vmatprep.subr.mxu0 0.0
    %270 = vmatpush1.msra.mxu0 %v238
    %271 = vmatprep.subr.mxu0 0.0
    %272 = vmatpush1.msra.mxu0 %v239
    %273 = vmatprep.subr.mxu0 0.0
    %274 = vmatpush1.msra.mxu0 %v240
    %275 = vmatprep.subr.mxu0 0.0
    %276 = vmatpush1.msra.mxu0 %v241
    %277 = vmatprep.subr.mxu0 0.0
    %278 = vmatpush1.msra.mxu0 %v242
    %279 = vmatprep.subr.mxu0 0.0
    %280 = vmatpush1.msra.mxu0 %v243
    %281 = vmatprep.subr.mxu0 0.0
    %282 = vmatpush1.msra.mxu0 0.0
    %283 = vmatprep.subr.mxu0 0.0
    %284 = vmatpush1.msra.mxu0 0.0
    %285 = vmatprep.subr.mxu0 0.0
    %286 = vmatpush1.msra.mxu0 0.0
    %287 = vmatprep.subr.mxu0 0.0
    %288 = vmatpush1.msra.mxu0 0.0
    %289 = vmatprep.subr.mxu0 0.0
    %290 = vmatpush1.msra.mxu0 0.0
    %291 = vmatprep.subr.mxu0 0.0
    %292 = vmatpush1.msra.mxu0 0.0
    %293 = vmatprep.subr.mxu0 0.0
    %294 = vmatpush1.msra.mxu0 0.0
    %295 = vmatprep.subr.mxu0 0.0
    %296 = vmatpush1.msra.mxu0 0.0
    %297 = vmatprep.subr.mxu0 0.0
    %298 = vmatpush1.msra.mxu0 0.0
    %299 = vmatprep.subr.mxu0 0.0
    %300 = vmatpush1.msra.mxu0 0.0
    %301 = vmatprep.subr.mxu0 0.0
    %302 = vmatpush1.msra.mxu0 0.0
    %303 = vmatprep.subr.mxu0 0.0
    %304 = vmatpush1.msra.mxu0 0.0
    %305 = vmatprep.subr.mxu0 0.0
    %306 = vmatpush1.msra.mxu0 0.0
    %307 = vmatprep.subr.mxu0 0.0
    %308 = vmatpush1.msra.mxu0 0.0
    %309 = vmatprep.subr.mxu0 0.0
    %310 = vmatpush1.msra.mxu0 0.0
    %311 = vmatprep.subr.mxu0 0.0
    %312 = vmatpush1.msra.mxu0 0.0
    %313 = vmatprep.mubr.f32.mxu0 0.0
    %314 = vmatmul.mubr.f32.gmra.mrb[0].mxu0 %v227
    %v315 = vpop.f32.mrb[0].mxu0
    %v316 = vadd.f32 %v248, %v315
    %v317 = vpop.f32.mrb[0].mxu0
    %318 = vdwg.mxu0
    %vm319 = vcmask 64512
    %320 = vst.msk [vmem:[#allocation9] sm:$0xff] %vm319, %v316
    // Predicated region
    $region30: #{tpu_custom_call.1} parent=1 // pred_check
      _
    $region31: #{tpu_custom_call.1} parent=1 // pred_check_branch
      %322 = sbr.rel (0) target = $region33
    $region32: #{tpu_custom_call.1} parent=1 // pred_region
      %s324 = ssub.s32 128, 128
      %325 = vsyncadd [#allocation6], %s324
      %s327 = sshll.u32 [#allocation9], 4
      %s328 = int_to_ptr.vmem [resolvable:$true] %s327
      %330 = dma.vmem_to_hbm [thread:$0]  %s328, 128, %s5, [#allocation6]
    $region33: #{tpu_custom_call.1} parent=1 // pred_fallthru
      _
    // Predicated region
    $region34: #{tpu_custom_call.1} parent=1 // pred_check
      _
    $region35: #{tpu_custom_call.1} parent=1 // pred_check_branch
      %332 = sbr.rel (0) target = $region37
    $region36: #{tpu_custom_call.1} parent=1 // pred_region
      %333 = dma.done [#allocation6], 128
    $region37: #{tpu_custom_call.1} parent=1 // pred_fallthru
      _
    %334 = vsyncpa [#allocation5], 1
    %335 = vsyncpa [#allocation8], 1
    %336 = vsyncpa [#allocation6], 1

</llo_original>
